<compile_context>
chip_gen: v5e
topology: v5e:2x2
jax: 0.10.0
libtpu: 0.0.40
codegen_flags: <defaults>
</compile_context>

<pallas_src>
import jax
import jax.numpy as jnp
from jax import lax
from jax.experimental import pallas as pl
from jax.experimental.pallas import tpu as pltpu


HEIGHT, WIDTH = 16, 16
N_LABELS = 12
LANE = 128            # pool-1 corner block width (vreg lane width)
C2_STRIDE = 32        # pool-2 corner lane offset inside one 128-lane vreg
N_OUT_PAD = 128       # lane-dense output slab width (12 valid columns)


def _round_up(n, m):
    return ((n + m - 1) // m) * m


# ----------------------------- fused Pallas kernel --------------------------

def _speech_fused_kernel(x_ref, w1_ref, b1_ref, w2_ref, b2_ref,
                         wa_ref, ba_ref, wb_ref, bb_ref, o_ref):
    f32, bf16 = jnp.float32, jnp.bfloat16
    x = x_ref[...]                                                    # (TB, 256) bf16

    # conv1 + bias + ReLU: one bf16 MXU matmul against the dense conv matrix.
    # Columns = [pool corner (4)] x [128 lanes: 9 windows x 8 ch, rest zero].
    y1 = jnp.dot(x, w1_ref[...], preferred_element_type=f32) + b1_ref[...]
    y1 = jnp.maximum(y1, 0.0)                                         # (TB, 512) f32

    # pool1 (2x2, floor): elementwise max of the 4 lane-aligned corner blocks.
    p1 = jnp.maximum(jnp.maximum(y1[:, 0:128], y1[:, 128:256]),
                     jnp.maximum(y1[:, 256:384], y1[:, 384:512]))     # (TB, 128)

    # conv2 + bias + ReLU. Columns = [pool corner (4)] x [32 lanes: 16 ch, rest 0].
    y2 = jnp.dot(p1.astype(bf16), w2_ref[...], preferred_element_type=f32) + b2_ref[...]
    y2 = jnp.maximum(y2, 0.0)                                         # (TB, 128) f32

    # pool2 (2x2 -> 1x1): log-step max over the 4 corners via XLU lane rotations.
    # Lanes 0:16 then hold the channel-ordered pooled map; the higher lanes hold
    # zeros / rotated copies and are killed by WA's zero K rows.
    t = jnp.maximum(y2, pltpu.roll(y2, shift=2 * C2_STRIDE, axis=1))
    p2 = jnp.maximum(t, pltpu.roll(t, shift=C2_STRIDE, axis=1))       # (TB, 128)

    # lin(16->32) folded with dnn1(32->64) (no activation in between), then ReLU.
    h = jnp.dot(p2.astype(bf16), wa_ref[...], preferred_element_type=f32) + ba_ref[...]
    h = jnp.maximum(h, 0.0)                                           # (TB, 64)

    # dnn2(64->32) folded with output(32->12); lane-dense 128-wide store.
    o_ref[...] = (jnp.dot(h.astype(bf16), wb_ref[...], preferred_element_type=f32)
                  + bb_ref[...])


def speech_model_forward(x, fp, *, tb=512):
    """Fused forward pass. x: (B, 16, 16). Returns (B, 12) float32."""
    B = x.shape[0]
    TB = min(tb, _round_up(max(B, 8), 8))        # sublane-aligned batch tile
    Bp = _round_up(B, TB)                        # pad batch to whole tiles
    x2 = x.reshape(B, HEIGHT * WIDTH).astype(jnp.bfloat16)
    if Bp != B:
        x2 = jnp.pad(x2, ((0, Bp - B), (0, 0)))
    n_tiles = Bp // TB

    def w_spec(arr):
        # Constant block index across the batch grid -> DMA'd once, VMEM-resident.
        return pl.BlockSpec(arr.shape, lambda i: (0,) * arr.ndim)

    weights = (fp['W1'], fp['b1'], fp['W2'], fp['b2'],
               fp['WA'], fp['bA'], fp['WB'], fp['bB'])

    flops = 2 * Bp * (256 * 512 + 128 * 128 + 128 * 64 + 64 * N_OUT_PAD)
    w_bytes = sum(int(w.size) * int(w.dtype.itemsize) for w in weights)
    cost = pl.CostEstimate(flops=int(flops), transcendentals=0,
                           bytes_accessed=int(x2.size) * 2 + w_bytes
                           + int(Bp) * N_OUT_PAD * 4)

    out = pl.pallas_call(
        _speech_fused_kernel,
        out_shape=jax.ShapeDtypeStruct((Bp, N_OUT_PAD), jnp.float32),
        grid_spec=pltpu.PrefetchScalarGridSpec(
            num_scalar_prefetch=0,
            grid=(n_tiles,),
            in_specs=[pl.BlockSpec((TB, HEIGHT * WIDTH), lambda i: (i, 0))]
                     + [w_spec(w) for w in weights],
            out_specs=pl.BlockSpec((TB, N_OUT_PAD), lambda i: (i, 0)),
        ),
        compiler_params=pltpu.CompilerParams(
            dimension_semantics=("parallel",)),
        cost_estimate=cost,
    )(x2, *weights)
    # Cheap wrapper-side crop: drop batch padding and the zero output columns.
    return out[:B, :N_LABELS]


# ------------------------ parameter preparation (one-time) ------------------

def _conv_pool_matrix(w_oihw, stride, H, W, Cin, corner_stride, n_cols):
    """Dense matrix M (H*W*Cin, n_cols) such that for an HWC-flattened input x,
    (x @ M) gives the VALID conv outputs with 2x2-pool corner c placed at lane
    offset c*corner_stride (window-major, channel-minor); unused lanes are 0."""
    Cout, _, KH, KW = w_oihw.shape
    sh, sw = stride
    OH = (H - KH) // sh + 1
    OW = (W - KW) // sw + 1
    PH, PW = OH // 2, OW // 2                    # floor-mode 2x2 pool output
    K = H * W * Cin
    ncols = PH * PW * Cout
    assert ncols <= corner_stride and 4 * corner_stride <= n_cols

    # Evaluate the (linear) conv on a one-hot basis to get its dense matrix.
    basis = jnp.eye(K, dtype=jnp.float32).reshape(K, H, W, Cin)
    basis = jnp.transpose(basis, (0, 3, 1, 2))                         # NCHW
    y = lax.conv_general_dilated(
        basis, w_oihw.astype(jnp.float32), stride, 'VALID',
        dimension_numbers=('NCHW', 'OIHW', 'NCHW'),
        precision=lax.Precision.HIGHEST)                               # (K,Cout,OH,OW)

    M = jnp.zeros((K, n_cols), jnp.float32)
    for dh in range(2):
        for dw in range(2):
            off = (dh * 2 + dw) * corner_stride
            blk = y[:, :, dh:dh + 2 * PH:2, dw:dw + 2 * PW:2]          # (K,Cout,PH,PW)
            blk = jnp.transpose(blk, (0, 2, 3, 1)).reshape(K, ncols)   # win-major, ch-minor
            M = M.at[:, off:off + ncols].set(blk)
    return M


def _pool_bias(b, n_windows, corner_stride):
    ncols = n_windows * b.shape[0]
    col = jnp.zeros((corner_stride,), jnp.float32).at[:ncols].set(
        jnp.tile(b.astype(jnp.float32), n_windows))
    return jnp.tile(col, 4).reshape(1, 4 * corner_stride)


def prepare_fused_params(p):
    """One-time transformation of PyTorch-layout parameters into fused-kernel
    matrices (bf16 weights, f32 biases; all padding lanes/rows are exact zeros)."""
    hp = lax.Precision.HIGHEST
    bf16, f32 = jnp.bfloat16, jnp.float32

    # conv1 (4x4 /2) + pool1 corner layout: (256, 512).
    W1 = _conv_pool_matrix(p['conv1_w'], (2, 2), HEIGHT, WIDTH, 1,
                           corner_stride=LANE, n_cols=4 * LANE)
    b1 = _pool_bias(p['conv1_b'], n_windows=3 * 3, corner_stride=LANE)

    # conv2 (2x2 /1) on the 3x3x8 pooled map (72 valid K rows, padded to 128);
    # the 4 pool-2 corners are packed at 32-lane offsets -> (128, 128).
    W2_72 = _conv_pool_matrix(p['conv2_w'], (1, 1), 3, 3, 8,
                              corner_stride=C2_STRIDE, n_cols=4 * C2_STRIDE)
    W2 = jnp.zeros((LANE, 4 * C2_STRIDE), f32).at[:72].set(W2_72)
    b2 = _pool_bias(p['conv2_b'], n_windows=1, corner_stride=C2_STRIDE)

    # lin (16->32, no act) folded into dnn1 (32->64); K rows 16:128 stay zero so
    # the rotated-copy lanes left behind by the pool2 rolls contribute nothing.
    WA16 = jnp.dot(p['lin_w'].T, p['dnn1_w'].T, precision=hp)           # (16, 64)
    WA = jnp.zeros((LANE, 64), f32).at[:16].set(WA16)
    bA = (jnp.dot(p['dnn1_w'], p['lin_b'], precision=hp)
          + p['dnn1_b']).reshape(1, 64).astype(f32)

    # dnn2 (64->32, no act) folded into output (32->12); padded to a lane-dense
    # 128-wide output slab (columns 12:128 are zero).
    WB12 = jnp.dot(p['dnn2_w'].T, p['out_w'].T, precision=hp)           # (64, 12)
    WB = jnp.zeros((64, N_OUT_PAD), f32).at[:, :N_LABELS].set(WB12)
    bB12 = jnp.dot(p['out_w'], p['dnn2_b'], precision=hp) + p['out_b']
    bB = jnp.zeros((1, N_OUT_PAD), f32).at[0, :N_LABELS].set(bB12)

    return dict(W1=W1.astype(bf16), b1=b1, W2=W2.astype(bf16), b2=b2,
                WA=WA.astype(bf16), bA=bA, WB=WB.astype(bf16), bB=bB)


# ------------------------------ reference & init -----------------------------

def reference_forward(x, p):
    """Independent pure-JAX (f32) reference of the original PyTorch forward."""
    hp = lax.Precision.HIGHEST
    dn = ('NCHW', 'OIHW', 'NCHW')
    y = x[:, None, :, :].astype(jnp.float32)
    y = lax.conv_general_dilated(y, p['conv1_w'], (2, 2), 'VALID',
                                 dimension_numbers=dn, precision=hp)
    y = jnp.maximum(y + p['conv1_b'][None, :, None, None], 0.0)
    y = lax.reduce_window(y, -jnp.inf, lax.max, (1, 1, 2, 2), (1, 1, 2, 2), 'VALID')
    y = lax.conv_general_dilated(y, p['conv2_w'], (1, 1), 'VALID',
                                 dimension_numbers=dn, precision=hp)
    y = jnp.maximum(y + p['conv2_b'][None, :, None, None], 0.0)
    y = lax.reduce_window(y, -jnp.inf, lax.max, (1, 1, 2, 2), (1, 1, 2, 2), 'VALID')
    y = y.reshape(y.shape[0], -1)
    y = jnp.dot(y, p['lin_w'].T, precision=hp) + p['lin_b']
    y = jnp.maximum(jnp.dot(y, p['dnn1_w'].T, precision=hp) + p['dnn1_b'], 0.0)
    y = jnp.dot(y, p['dnn2_w'].T, precision=hp) + p['dnn2_b']
    return jnp.dot(y, p['out_w'].T, precision=hp) + p['out_b']


def init_params(key):
    ks = jax.random.split(key, 12)
    scale = 0.05
    return {
        'conv1_w': jax.random.normal(ks[0], (8, 1, 4, 4), jnp.float32) * scale,
        'conv1_b': jax.random.normal(ks[1], (8,), jnp.float32) * scale,
        'conv2_w': jax.random.normal(ks[2], (16, 8, 2, 2), jnp.float32) * scale,
        'conv2_b': jax.random.normal(ks[3], (16,), jnp.float32) * scale,
        'lin_w': jax.random.normal(ks[4], (32, 16), jnp.float32) * scale,
        'lin_b': jax.random.normal(ks[5], (32,), jnp.float32) * scale,
        'dnn1_w': jax.random.normal(ks[6], (64, 32), jnp.float32) * scale,
        'dnn1_b': jax.random.normal(ks[7], (64,), jnp.float32) * scale,
        'dnn2_w': jax.random.normal(ks[8], (32, 64), jnp.float32) * scale,
        'dnn2_b': jax.random.normal(ks[9], (32,), jnp.float32) * scale,
        'out_w': jax.random.normal(ks[10], (12, 32), jnp.float32) * scale,
        'out_b': jax.random.normal(ks[11], (12,), jnp.float32) * scale,
    }


if __name__ == "__main__":
    key = jax.random.PRNGKey(0)
    k_x, k_p = jax.random.split(key)
    params = init_params(k_p)
    fused = prepare_fused_params(params)   # one-time weight-layout prep (not in hot path)

    B = 2
    x = jax.random.normal(k_x, (B, HEIGHT, WIDTH), jnp.float32)

    fwd = jax.jit(speech_model_forward)
    out = jax.block_until_ready(fwd(x, fused))
    assert out.shape == (B, N_LABELS), out.shape

    ref = jax.block_until_ready(reference_forward(x, params))
    max_err = float(jnp.max(jnp.abs(out - ref)))
    # bf16 weights / activations vs. the f32 reference: allow ~1e-2 absolute.
    assert jnp.allclose(out, ref, atol=1e-2, rtol=1e-2), max_err

    print("KERNEL_OK")
</pallas_src>

<mosaic_0001>
module attributes {stable_mosaic.version = 11 : i64} {
  func.func @_speech_fused_kernel(%arg0: i32, %arg1: memref<8x256xbf16, #tpu.memory_space<vmem>>, %arg2: memref<256x512xbf16, #tpu.memory_space<vmem>>, %arg3: memref<1x512xf32, #tpu.memory_space<vmem>>, %arg4: memref<128x128xbf16, #tpu.memory_space<vmem>>, %arg5: memref<1x128xf32, #tpu.memory_space<vmem>>, %arg6: memref<128x64xbf16, #tpu.memory_space<vmem>>, %arg7: memref<1x64xf32, #tpu.memory_space<vmem>>, %arg8: memref<64x128xbf16, #tpu.memory_space<vmem>>, %arg9: memref<1x128xf32, #tpu.memory_space<vmem>>, %arg10: memref<8x128xf32, #tpu.memory_space<vmem>>) attributes {dimension_semantics = [#tpu.dimension_semantics<parallel>], iteration_bounds = array<i64: 1>, scalar_prefetch = 0 : i64, scratch_operands = 0 : i64, tpu.core_type = #tpu.core_type<tc>, window_params = [{transform_indices = @transform_0, window_bounds = array<i64: 8, 256>}, {pipeline_mode = #tpu.pipeline_mode<synchronous>, transform_indices = @transform_1, window_bounds = array<i64: 256, 512>}, {pipeline_mode = #tpu.pipeline_mode<synchronous>, transform_indices = @transform_2, window_bounds = array<i64: 1, 512>}, {pipeline_mode = #tpu.pipeline_mode<synchronous>, transform_indices = @transform_3, window_bounds = array<i64: 128, 128>}, {pipeline_mode = #tpu.pipeline_mode<synchronous>, transform_indices = @transform_4, window_bounds = array<i64: 1, 128>}, {pipeline_mode = #tpu.pipeline_mode<synchronous>, transform_indices = @transform_5, window_bounds = array<i64: 128, 64>}, {pipeline_mode = #tpu.pipeline_mode<synchronous>, transform_indices = @transform_6, window_bounds = array<i64: 1, 64>}, {pipeline_mode = #tpu.pipeline_mode<synchronous>, transform_indices = @transform_7, window_bounds = array<i64: 64, 128>}, {pipeline_mode = #tpu.pipeline_mode<synchronous>, transform_indices = @transform_8, window_bounds = array<i64: 1, 128>}, {transform_indices = @transform_9, window_bounds = array<i64: 8, 128>}]} {
    %c0 = arith.constant 0 : index
    %c0_0 = arith.constant 0 : index
    %0 = vector.load %arg1[%c0, %c0_0] : memref<8x256xbf16, #tpu.memory_space<vmem>>, vector<8x256xbf16>
    %c0_1 = arith.constant 0 : index
    %c0_2 = arith.constant 0 : index
    %1 = vector.load %arg2[%c0_1, %c0_2] : memref<256x512xbf16, #tpu.memory_space<vmem>>, vector<256x512xbf16>
    %cst = arith.constant dense<0.000000e+00> : vector<8x512xf32>
    %2 = tpu.matmul %0, %1, %cst {dimension_numbers = #tpu.dot_dimension_numbers<[1], [0], [0], [1], [0, 0, 1, 1], [], []>} : vector<8x256xbf16>, vector<256x512xbf16>, vector<8x512xf32> -> vector<8x512xf32>
    %c0_3 = arith.constant 0 : index
    %c0_4 = arith.constant 0 : index
    %3 = vector.load %arg3[%c0_3, %c0_4] : memref<1x512xf32, #tpu.memory_space<vmem>>, vector<1x512xf32>
    %4 = vector.broadcast %3 : vector<1x512xf32> to vector<8x512xf32>
    %5 = arith.addf %2, %4 : vector<8x512xf32>
    %cst_5 = arith.constant 0.000000e+00 : f32
    %6 = vector.broadcast %cst_5 : f32 to vector<8x512xf32>
    %7 = arith.maximumf %5, %6 : vector<8x512xf32>
    %8 = vector.extract_strided_slice %7 {offsets = [0, 0], sizes = [8, 128], strides = [1, 1]} : vector<8x512xf32> to vector<8x128xf32>
    %9 = vector.extract_strided_slice %7 {offsets = [0, 128], sizes = [8, 128], strides = [1, 1]} : vector<8x512xf32> to vector<8x128xf32>
    %10 = arith.maximumf %8, %9 : vector<8x128xf32>
    %11 = vector.extract_strided_slice %7 {offsets = [0, 256], sizes = [8, 128], strides = [1, 1]} : vector<8x512xf32> to vector<8x128xf32>
    %12 = vector.extract_strided_slice %7 {offsets = [0, 384], sizes = [8, 128], strides = [1, 1]} : vector<8x512xf32> to vector<8x128xf32>
    %13 = arith.maximumf %11, %12 : vector<8x128xf32>
    %14 = arith.maximumf %10, %13 : vector<8x128xf32>
    %15 = arith.truncf %14 : vector<8x128xf32> to vector<8x128xbf16>
    %c0_6 = arith.constant 0 : index
    %c0_7 = arith.constant 0 : index
    %16 = vector.load %arg4[%c0_6, %c0_7] : memref<128x128xbf16, #tpu.memory_space<vmem>>, vector<128x128xbf16>
    %cst_8 = arith.constant dense<0.000000e+00> : vector<8x128xf32>
    %17 = tpu.matmul %15, %16, %cst_8 {dimension_numbers = #tpu.dot_dimension_numbers<[1], [0], [0], [1], [0, 0, 1, 1], [], []>} : vector<8x128xbf16>, vector<128x128xbf16>, vector<8x128xf32> -> vector<8x128xf32>
    %c0_9 = arith.constant 0 : index
    %c0_10 = arith.constant 0 : index
    %18 = vector.load %arg5[%c0_9, %c0_10] : memref<1x128xf32, #tpu.memory_space<vmem>>, vector<1x128xf32>
    %19 = vector.broadcast %18 : vector<1x128xf32> to vector<8x128xf32>
    %20 = arith.addf %17, %19 : vector<8x128xf32>
    %cst_11 = arith.constant 0.000000e+00 : f32
    %21 = vector.broadcast %cst_11 : f32 to vector<8x128xf32>
    %22 = arith.maximumf %20, %21 : vector<8x128xf32>
    %c64_i32 = arith.constant 64 : i32
    %23 = tpu.dynamic_rotate %22 by %c64_i32 dim 1 : vector<8x128xf32>, i32 -> vector<8x128xf32>
    %24 = arith.maximumf %22, %23 : vector<8x128xf32>
    %c32_i32 = arith.constant 32 : i32
    %25 = tpu.dynamic_rotate %24 by %c32_i32 dim 1 : vector<8x128xf32>, i32 -> vector<8x128xf32>
    %26 = arith.maximumf %24, %25 : vector<8x128xf32>
    %27 = arith.truncf %26 : vector<8x128xf32> to vector<8x128xbf16>
    %c0_12 = arith.constant 0 : index
    %c0_13 = arith.constant 0 : index
    %28 = vector.load %arg6[%c0_12, %c0_13] : memref<128x64xbf16, #tpu.memory_space<vmem>>, vector<128x64xbf16>
    %cst_14 = arith.constant dense<0.000000e+00> : vector<8x64xf32>
    %29 = tpu.matmul %27, %28, %cst_14 {dimension_numbers = #tpu.dot_dimension_numbers<[1], [0], [0], [1], [0, 0, 1, 1], [], []>} : vector<8x128xbf16>, vector<128x64xbf16>, vector<8x64xf32> -> vector<8x64xf32>
    %c0_15 = arith.constant 0 : index
    %c0_16 = arith.constant 0 : index
    %30 = vector.load %arg7[%c0_15, %c0_16] : memref<1x64xf32, #tpu.memory_space<vmem>>, vector<1x64xf32>
    %31 = vector.broadcast %30 : vector<1x64xf32> to vector<8x64xf32>
    %32 = arith.addf %29, %31 : vector<8x64xf32>
    %cst_17 = arith.constant 0.000000e+00 : f32
    %33 = vector.broadcast %cst_17 : f32 to vector<8x64xf32>
    %34 = arith.maximumf %32, %33 : vector<8x64xf32>
    %35 = arith.truncf %34 : vector<8x64xf32> to vector<8x64xbf16>
    %c0_18 = arith.constant 0 : index
    %c0_19 = arith.constant 0 : index
    %36 = vector.load %arg8[%c0_18, %c0_19] : memref<64x128xbf16, #tpu.memory_space<vmem>>, vector<64x128xbf16>
    %cst_20 = arith.constant dense<0.000000e+00> : vector<8x128xf32>
    %37 = tpu.matmul %35, %36, %cst_20 {dimension_numbers = #tpu.dot_dimension_numbers<[1], [0], [0], [1], [0, 0, 1, 1], [], []>} : vector<8x64xbf16>, vector<64x128xbf16>, vector<8x128xf32> -> vector<8x128xf32>
    %c0_21 = arith.constant 0 : index
    %c0_22 = arith.constant 0 : index
    %38 = vector.load %arg9[%c0_21, %c0_22] : memref<1x128xf32, #tpu.memory_space<vmem>>, vector<1x128xf32>
    %39 = vector.broadcast %38 : vector<1x128xf32> to vector<8x128xf32>
    %40 = arith.addf %37, %39 : vector<8x128xf32>
    %c0_23 = arith.constant 0 : index
    %c0_24 = arith.constant 0 : index
    %41 = vector.load %arg10[%c0_23, %c0_24] : memref<8x128xf32, #tpu.memory_space<vmem>>, vector<8x128xf32>
    tpu.vector_store %arg10[%c0_23, %c0_24], %40 {strides = array<i32>} : memref<8x128xf32, #tpu.memory_space<vmem>>, vector<8x128xf32>,
    return
  }
  func.func @transform_0(%arg0: i32) -> (i32, i32) {
    %c0_i32 = arith.constant 0 : i32
    %c0_i32_0 = arith.constant 0 : i32
    return %arg0, %c0_i32 : i32, i32
  }
  func.func @transform_1(%arg0: i32) -> (i32, i32) {
    %c0_i32 = arith.constant 0 : i32
    %c0_i32_0 = arith.constant 0 : i32
    %c0_i32_1 = arith.constant 0 : i32
    return %c0_i32, %c0_i32_0 : i32, i32
  }
  func.func @transform_2(%arg0: i32) -> (i32, i32) {
    %c0_i32 = arith.constant 0 : i32
    %c0_i32_0 = arith.constant 0 : i32
    %c0_i32_1 = arith.constant 0 : i32
    return %c0_i32, %c0_i32_0 : i32, i32
  }
  func.func @transform_3(%arg0: i32) -> (i32, i32) {
    %c0_i32 = arith.constant 0 : i32
    %c0_i32_0 = arith.constant 0 : i32
    %c0_i32_1 = arith.constant 0 : i32
    return %c0_i32, %c0_i32_0 : i32, i32
  }
  func.func @transform_4(%arg0: i32) -> (i32, i32) {
    %c0_i32 = arith.constant 0 : i32
    %c0_i32_0 = arith.constant 0 : i32
    %c0_i32_1 = arith.constant 0 : i32
    return %c0_i32, %c0_i32_0 : i32, i32
  }
  func.func @transform_5(%arg0: i32) -> (i32, i32) {
    %c0_i32 = arith.constant 0 : i32
    %c0_i32_0 = arith.constant 0 : i32
    %c0_i32_1 = arith.constant 0 : i32
    return %c0_i32, %c0_i32_0 : i32, i32
  }
  func.func @transform_6(%arg0: i32) -> (i32, i32) {
    %c0_i32 = arith.constant 0 : i32
    %c0_i32_0 = arith.constant 0 : i32
    %c0_i32_1 = arith.constant 0 : i32
    return %c0_i32, %c0_i32_0 : i32, i32
  }
  func.func @transform_7(%arg0: i32) -> (i32, i32) {
    %c0_i32 = arith.constant 0 : i32
    %c0_i32_0 = arith.constant 0 : i32
    %c0_i32_1 = arith.constant 0 : i32
    return %c0_i32, %c0_i32_0 : i32, i32
  }
  func.func @transform_8(%arg0: i32) -> (i32, i32) {
    %c0_i32 = arith.constant 0 : i32
    %c0_i32_0 = arith.constant 0 : i32
    %c0_i32_1 = arith.constant 0 : i32
    return %c0_i32, %c0_i32_0 : i32, i32
  }
  func.func @transform_9(%arg0: i32) -> (i32, i32) {
    %c0_i32 = arith.constant 0 : i32
    %c0_i32_0 = arith.constant 0 : i32
    return %arg0, %c0_i32 : i32, i32
  }
}

</mosaic_0001>

<llo_original>
// kernel: speech_model_forward.1
$region0: #{speech_model_forward.1}
  #allocation0 [shape = 'u32[]', space=smem, size = 0x4, offset = 0x4, fixed_abs, tag = 'smem constant byte address 0x4 - core index']
  #allocation1 [shape = 'u32[72,128]{1,0:T(1,128)}', space=vmem, size = 0x9000, scoped, tag = 'internal scratch']
  %s0 = inlined_call_operand.vmem [shape: bf16[8,256], index: 0, kind: input, shape index: {}]
  %s1 = inlined_call_operand.hbm [shape: bf16[256,512], index: 1, kind: input, shape index: {}]
  %s2 = inlined_call_operand.vmem [shape: f32[1,512], index: 2, kind: input, shape index: {}]
  %s3 = inlined_call_operand.vmem [shape: bf16[128,128], index: 3, kind: input, shape index: {}]
  %s4 = inlined_call_operand.vmem [shape: f32[1,128], index: 4, kind: input, shape index: {}]
  %s5 = inlined_call_operand.vmem [shape: bf16[128,64], index: 5, kind: input, shape index: {}]
  %s6 = inlined_call_operand.vmem [shape: f32[1,64], index: 6, kind: input, shape index: {}]
  %s7 = inlined_call_operand.vmem [shape: bf16[64,128], index: 7, kind: input, shape index: {}]
  %s8 = inlined_call_operand.vmem [shape: f32[1,128], index: 8, kind: input, shape index: {}]
  %s9 = inlined_call_operand.vmem [shape: f32[8,128], index: 9, kind: output, shape index: {}]
  %s10 = sld [smem:[#allocation0]]
  $region50: #{speech_model_forward.1} parent=0
    _
  %s12 = ssub.s32 1, %s10
  %s13 = scalar_select 0, %s12, %s10
  $region1: #{speech_model_forward.1} parent=0
    #allocation2 [shape = 'u8[262144]{0}', space=vmem, size = 0x40000, scoped, tag = 'input window, operand 1, single buffered']
    #allocation3 [shape = 's32[1]{0}', space=sflag, size = 0x4, scoped, tag = 'scoped memory for speech_model_forward.1']
    %14 = vsyncpa [#allocation3], 0
    // Predicated region
    $region2: #{speech_model_forward.1} parent=1 // pred_check
      _
    $region3: #{speech_model_forward.1} parent=1 // pred_check_branch
      %16 = sbr.rel (0) target = $region5
    $region4: #{speech_model_forward.1} parent=1 // pred_region
      _
    $region5: #{speech_model_forward.1} parent=1 // pred_fallthru
      _
    // Predicated region
    $region6: #{speech_model_forward.1} parent=1 // pred_check
      _
    $region7: #{speech_model_forward.1} parent=1 // pred_check_branch
      %18 = sbr.rel (0) target = $region9
    $region8: #{speech_model_forward.1} parent=1 // pred_region
      %20 = vsyncadd [#allocation3], 0
      %s21 = sshll.u32 %s1, 4
      %s22 = int_to_ptr.hbm [resolvable:$true] %s21
      %s23 = sshll.u32 [#allocation2], 4
      %s24 = int_to_ptr.vmem [resolvable:$true] %s23
      %29 = dma.hbm_to_vmem [thread:$0]  %s22, 8192, %s24, [#allocation3], 256, 256, 16
    $region9: #{speech_model_forward.1} parent=1 // pred_fallthru
      _
    // Predicated region
    $region10: #{speech_model_forward.1} parent=1 // pred_check
      _
    $region11: #{speech_model_forward.1} parent=1 // pred_check_branch
      %31 = sbr.rel (0) target = $region13
    $region12: #{speech_model_forward.1} parent=1 // pred_region
      _
    $region13: #{speech_model_forward.1} parent=1 // pred_fallthru
      _
    // Predicated region
    $region14: #{speech_model_forward.1} parent=1 // pred_check
      _
    $region15: #{speech_model_forward.1} parent=1 // pred_check_branch
      %33 = sbr.rel (0) target = $region17
    $region16: #{speech_model_forward.1} parent=1 // pred_region
      _
    $region17: #{speech_model_forward.1} parent=1 // pred_fallthru
      _
    // Predicated region
    $region18: #{speech_model_forward.1} parent=1 // pred_check
      _
    $region19: #{speech_model_forward.1} parent=1 // pred_check_branch
      %35 = sbr.rel (0) target = $region21
    $region20: #{speech_model_forward.1} parent=1 // pred_region
      _
    $region21: #{speech_model_forward.1} parent=1 // pred_fallthru
      _
    // Predicated region
    $region22: #{speech_model_forward.1} parent=1 // pred_check
      _
    $region23: #{speech_model_forward.1} parent=1 // pred_check_branch
      %37 = sbr.rel (0) target = $region25
    $region24: #{speech_model_forward.1} parent=1 // pred_region
      _
    $region25: #{speech_model_forward.1} parent=1 // pred_fallthru
      _
    // Predicated region
    $region26: #{speech_model_forward.1} parent=1 // pred_check
      _
    $region27: #{speech_model_forward.1} parent=1 // pred_check_branch
      %39 = sbr.rel (0) target = $region29
    $region28: #{speech_model_forward.1} parent=1 // pred_region
      _
    $region29: #{speech_model_forward.1} parent=1 // pred_fallthru
      _
    // Predicated region
    $region30: #{speech_model_forward.1} parent=1 // pred_check
      _
    $region31: #{speech_model_forward.1} parent=1 // pred_check_branch
      %41 = sbr.rel (0) target = $region33
    $region32: #{speech_model_forward.1} parent=1 // pred_region
      _
    $region33: #{speech_model_forward.1} parent=1 // pred_fallthru
      _
    // Predicated region
    $region34: #{speech_model_forward.1} parent=1 // pred_check
      _
    $region35: #{speech_model_forward.1} parent=1 // pred_check_branch
      %43 = sbr.rel (0) target = $region37
    $region36: #{speech_model_forward.1} parent=1 // pred_region
      _
    $region37: #{speech_model_forward.1} parent=1 // pred_fallthru
      _
    // Predicated region
    $region38: #{speech_model_forward.1} parent=1 // pred_check
      _
    $region39: #{speech_model_forward.1} parent=1 // pred_check_branch
      %45 = sbr.rel (0) target = $region41
    $region40: #{speech_model_forward.1} parent=1 // pred_region
      %47 = dma.done [#allocation3], 8192
    $region41: #{speech_model_forward.1} parent=1 // pred_fallthru
      _
    %v49 = vld [vmem:[%s0] sm:$0xff]
    %v50 = vld [vmem:[#allocation2] sm:$0xff]
    %v51 = vld [vmem:[#allocation2 + $0x8] sm:$0xff]
    %v52 = vld [vmem:[#allocation2 + $0x10] sm:$0xff]
    %v53 = vld [vmem:[#allocation2 + $0x18] sm:$0xff]
    %v54 = vld [vmem:[#allocation2 + $0x20] sm:$0xff]
    %v55 = vld [vmem:[#allocation2 + $0x28] sm:$0xff]
    %v56 = vld [vmem:[#allocation2 + $0x30] sm:$0xff]
    %v57 = vld [vmem:[#allocation2 + $0x38] sm:$0xff]
    %v58 = vld [vmem:[#allocation2 + $0x40] sm:$0xff]
    %v59 = vld [vmem:[#allocation2 + $0x48] sm:$0xff]
    %v60 = vld [vmem:[#allocation2 + $0x50] sm:$0xff]
    %v61 = vld [vmem:[#allocation2 + $0x58] sm:$0xff]
    %v62 = vld [vmem:[#allocation2 + $0x60] sm:$0xff]
    %v63 = vld [vmem:[#allocation2 + $0x68] sm:$0xff]
    %v64 = vld [vmem:[#allocation2 + $0x70] sm:$0xff]
    %v65 = vld [vmem:[#allocation2 + $0x78] sm:$0xff]
    %v66 = vld [vmem:[#allocation2 + $0x80] sm:$0xff]
    %v67 = vld [vmem:[#allocation2 + $0x88] sm:$0xff]
    %v68 = vld [vmem:[#allocation2 + $0x90] sm:$0xff]
    %v69 = vld [vmem:[#allocation2 + $0x98] sm:$0xff]
    %v70 = vld [vmem:[#allocation2 + $0xa0] sm:$0xff]
    %v71 = vld [vmem:[#allocation2 + $0xa8] sm:$0xff]
    %v72 = vld [vmem:[#allocation2 + $0xb0] sm:$0xff]
    %v73 = vld [vmem:[#allocation2 + $0xb8] sm:$0xff]
    %v74 = vld [vmem:[#allocation2 + $0xc0] sm:$0xff]
    %v75 = vld [vmem:[#allocation2 + $0xc8] sm:$0xff]
    %v76 = vld [vmem:[#allocation2 + $0xd0] sm:$0xff]
    %v77 = vld [vmem:[#allocation2 + $0xd8] sm:$0xff]
    %v78 = vld [vmem:[#allocation2 + $0xe0] sm:$0xff]
    %v79 = vld [vmem:[#allocation2 + $0xe8] sm:$0xff]
    %v80 = vld [vmem:[#allocation2 + $0xf0] sm:$0xff]
    %v81 = vld [vmem:[#allocation2 + $0xf8] sm:$0xff]
    %v82 = vld [vmem:[#allocation2 + $0x100] sm:$0xff]
    %v83 = vld [vmem:[#allocation2 + $0x108] sm:$0xff]
    %v84 = vld [vmem:[#allocation2 + $0x110] sm:$0xff]
    %v85 = vld [vmem:[#allocation2 + $0x118] sm:$0xff]
    %v86 = vld [vmem:[#allocation2 + $0x120] sm:$0xff]
    %v87 = vld [vmem:[#allocation2 + $0x128] sm:$0xff]
    %v88 = vld [vmem:[#allocation2 + $0x130] sm:$0xff]
    %v89 = vld [vmem:[#allocation2 + $0x138] sm:$0xff]
    %v90 = vld [vmem:[#allocation2 + $0x140] sm:$0xff]
    %v91 = vld [vmem:[#allocation2 + $0x148] sm:$0xff]
    %v92 = vld [vmem:[#allocation2 + $0x150] sm:$0xff]
    %v93 = vld [vmem:[#allocation2 + $0x158] sm:$0xff]
    %v94 = vld [vmem:[#allocation2 + $0x160] sm:$0xff]
    %v95 = vld [vmem:[#allocation2 + $0x168] sm:$0xff]
    %v96 = vld [vmem:[#allocation2 + $0x170] sm:$0xff]
    %v97 = vld [vmem:[#allocation2 + $0x178] sm:$0xff]
    %v98 = vld [vmem:[#allocation2 + $0x180] sm:$0xff]
    %v99 = vld [vmem:[#allocation2 + $0x188] sm:$0xff]
    %v100 = vld [vmem:[#allocation2 + $0x190] sm:$0xff]
    %v101 = vld [vmem:[#allocation2 + $0x198] sm:$0xff]
    %v102 = vld [vmem:[#allocation2 + $0x1a0] sm:$0xff]
    %v103 = vld [vmem:[#allocation2 + $0x1a8] sm:$0xff]
    %v104 = vld [vmem:[#allocation2 + $0x1b0] sm:$0xff]
    %v105 = vld [vmem:[#allocation2 + $0x1b8] sm:$0xff]
    %v106 = vld [vmem:[#allocation2 + $0x1c0] sm:$0xff]
    %v107 = vld [vmem:[#allocation2 + $0x1c8] sm:$0xff]
    %v108 = vld [vmem:[#allocation2 + $0x1d0] sm:$0xff]
    %v109 = vld [vmem:[#allocation2 + $0x1d8] sm:$0xff]
    %v110 = vld [vmem:[#allocation2 + $0x1e0] sm:$0xff]
    %v111 = vld [vmem:[#allocation2 + $0x1e8] sm:$0xff]
    %v112 = vld [vmem:[#allocation2 + $0x1f0] sm:$0xff]
    %v113 = vld [vmem:[#allocation2 + $0x1f8] sm:$0xff]
    %v114 = vld [vmem:[%s2] sm:$0xf]
    %v116 = vperm.slane %v114, 0
    %v117 = vperm.slane %v114, 1
    %v118 = vperm.slane %v114, 2
    %v119 = vperm.slane %v114, 3
    %v125 = vunpack.c.l.b16 %v49
    %v126 = vunpack.c.h.b16 %v49
    %v127 = vpack.c.b16 %v125, %v125
    %v128 = vpack.c.b16 %v126, %v126
    %v195 = vunpack.c.l.b16 %v50
    %v196 = vunpack.c.h.b16 %v50
    %v197 = vunpack.c.l.b16 %v51
    %v198 = vunpack.c.h.b16 %v51
    %v199 = vunpack.c.l.b16 %v52
    %v200 = vunpack.c.h.b16 %v52
    %v201 = vunpack.c.l.b16 %v53
    %v202 = vunpack.c.h.b16 %v53
    %v203 = vunpack.c.l.b16 %v54
    %v204 = vunpack.c.h.b16 %v54
    %v205 = vunpack.c.l.b16 %v55
    %v206 = vunpack.c.h.b16 %v55
    %v207 = vunpack.c.l.b16 %v56
    %v208 = vunpack.c.h.b16 %v56
    %v209 = vunpack.c.l.b16 %v57
    %v210 = vunpack.c.h.b16 %v57
    %v211 = vunpack.c.l.b16 %v58
    %v212 = vunpack.c.h.b16 %v58
    %v213 = vunpack.c.l.b16 %v59
    %v214 = vunpack.c.h.b16 %v59
    %v215 = vunpack.c.l.b16 %v60
    %v216 = vunpack.c.h.b16 %v60
    %v217 = vunpack.c.l.b16 %v61
    %v218 = vunpack.c.h.b16 %v61
    %v219 = vunpack.c.l.b16 %v62
    %v220 = vunpack.c.h.b16 %v62
    %v221 = vunpack.c.l.b16 %v63
    %v222 = vunpack.c.h.b16 %v63
    %v223 = vunpack.c.l.b16 %v64
    %v224 = vunpack.c.h.b16 %v64
    %v225 = vunpack.c.l.b16 %v65
    %v226 = vunpack.c.h.b16 %v65
    %v227 = vunpack.c.l.b16 %v66
    %v228 = vunpack.c.h.b16 %v66
    %v229 = vunpack.c.l.b16 %v67
    %v230 = vunpack.c.h.b16 %v67
    %v231 = vunpack.c.l.b16 %v68
    %v232 = vunpack.c.h.b16 %v68
    %v233 = vunpack.c.l.b16 %v69
    %v234 = vunpack.c.h.b16 %v69
    %v235 = vunpack.c.l.b16 %v70
    %v236 = vunpack.c.h.b16 %v70
    %v237 = vunpack.c.l.b16 %v71
    %v238 = vunpack.c.h.b16 %v71
    %v239 = vunpack.c.l.b16 %v72
    %v240 = vunpack.c.h.b16 %v72
    %v241 = vunpack.c.l.b16 %v73
    %v242 = vunpack.c.h.b16 %v73
    %v243 = vunpack.c.l.b16 %v74
    %v244 = vunpack.c.h.b16 %v74
    %v245 = vunpack.c.l.b16 %v75
    %v246 = vunpack.c.h.b16 %v75
    %v247 = vunpack.c.l.b16 %v76
    %v248 = vunpack.c.h.b16 %v76
    %v249 = vunpack.c.l.b16 %v77
    %v250 = vunpack.c.h.b16 %v77
    %v251 = vunpack.c.l.b16 %v78
    %v252 = vunpack.c.h.b16 %v78
    %v253 = vunpack.c.l.b16 %v79
    %v254 = vunpack.c.h.b16 %v79
    %v255 = vunpack.c.l.b16 %v80
    %v256 = vunpack.c.h.b16 %v80
    %v257 = vunpack.c.l.b16 %v81
    %v258 = vunpack.c.h.b16 %v81
    %v259 = vunpack.c.l.b16 %v82
    %v260 = vunpack.c.h.b16 %v82
    %v261 = vunpack.c.l.b16 %v83
    %v262 = vunpack.c.h.b16 %v83
    %v263 = vunpack.c.l.b16 %v84
    %v264 = vunpack.c.h.b16 %v84
    %v265 = vunpack.c.l.b16 %v85
    %v266 = vunpack.c.h.b16 %v85
    %v267 = vunpack.c.l.b16 %v86
    %v268 = vunpack.c.h.b16 %v86
    %v269 = vunpack.c.l.b16 %v87
    %v270 = vunpack.c.h.b16 %v87
    %v271 = vunpack.c.l.b16 %v88
    %v272 = vunpack.c.h.b16 %v88
    %v273 = vunpack.c.l.b16 %v89
    %v274 = vunpack.c.h.b16 %v89
    %v275 = vunpack.c.l.b16 %v90
    %v276 = vunpack.c.h.b16 %v90
    %v277 = vunpack.c.l.b16 %v91
    %v278 = vunpack.c.h.b16 %v91
    %v279 = vunpack.c.l.b16 %v92
    %v280 = vunpack.c.h.b16 %v92
    %v281 = vunpack.c.l.b16 %v93
    %v282 = vunpack.c.h.b16 %v93
    %v283 = vunpack.c.l.b16 %v94
    %v284 = vunpack.c.h.b16 %v94
    %v285 = vunpack.c.l.b16 %v95
    %v286 = vunpack.c.h.b16 %v95
    %v287 = vunpack.c.l.b16 %v96
    %v288 = vunpack.c.h.b16 %v96
    %v289 = vunpack.c.l.b16 %v97
    %v290 = vunpack.c.h.b16 %v97
    %v291 = vunpack.c.l.b16 %v98
    %v292 = vunpack.c.h.b16 %v98
    %v293 = vunpack.c.l.b16 %v99
    %v294 = vunpack.c.h.b16 %v99
    %v295 = vunpack.c.l.b16 %v100
    %v296 = vunpack.c.h.b16 %v100
    %v297 = vunpack.c.l.b16 %v101
    %v298 = vunpack.c.h.b16 %v101
    %v299 = vunpack.c.l.b16 %v102
    %v300 = vunpack.c.h.b16 %v102
    %v301 = vunpack.c.l.b16 %v103
    %v302 = vunpack.c.h.b16 %v103
    %v303 = vunpack.c.l.b16 %v104
    %v304 = vunpack.c.h.b16 %v104
    %v305 = vunpack.c.l.b16 %v105
    %v306 = vunpack.c.h.b16 %v105
    %v307 = vunpack.c.l.b16 %v106
    %v308 = vunpack.c.h.b16 %v106
    %v309 = vunpack.c.l.b16 %v107
    %v310 = vunpack.c.h.b16 %v107
    %v311 = vunpack.c.l.b16 %v108
    %v312 = vunpack.c.h.b16 %v108
    %v313 = vunpack.c.l.b16 %v109
    %v314 = vunpack.c.h.b16 %v109
    %v315 = vunpack.c.l.b16 %v110
    %v316 = vunpack.c.h.b16 %v110
    %v317 = vunpack.c.l.b16 %v111
    %v318 = vunpack.c.h.b16 %v111
    %v319 = vunpack.c.l.b16 %v112
    %v320 = vunpack.c.h.b16 %v112
    %v321 = vunpack.c.l.b16 %v113
    %v322 = vunpack.c.h.b16 %v113
    %v323 = vpack.c.b16 %v199, %v195
    %v324 = vpack.c.b16 %v200, %v196
    %v325 = vpack.c.b16 %v201, %v197
    %v326 = vpack.c.b16 %v202, %v198
    %v327 = vpack.c.b16 %v207, %v203
    %v328 = vpack.c.b16 %v208, %v204
    %v329 = vpack.c.b16 %v209, %v205
    %v330 = vpack.c.b16 %v210, %v206
    %v331 = vpack.c.b16 %v215, %v211
    %v332 = vpack.c.b16 %v216, %v212
    %v333 = vpack.c.b16 %v217, %v213
    %v334 = vpack.c.b16 %v218, %v214
    %v335 = vpack.c.b16 %v223, %v219
    %v336 = vpack.c.b16 %v224, %v220
    %v337 = vpack.c.b16 %v225, %v221
    %v338 = vpack.c.b16 %v226, %v222
    %v339 = vpack.c.b16 %v231, %v227
    %v340 = vpack.c.b16 %v232, %v228
    %v341 = vpack.c.b16 %v233, %v229
    %v342 = vpack.c.b16 %v234, %v230
    %v343 = vpack.c.b16 %v239, %v235
    %v344 = vpack.c.b16 %v240, %v236
    %v345 = vpack.c.b16 %v241, %v237
    %v346 = vpack.c.b16 %v242, %v238
    %v347 = vpack.c.b16 %v247, %v243
    %v348 = vpack.c.b16 %v248, %v244
    %v349 = vpack.c.b16 %v249, %v245
    %v350 = vpack.c.b16 %v250, %v246
    %v351 = vpack.c.b16 %v255, %v251
    %v352 = vpack.c.b16 %v256, %v252
    %v353 = vpack.c.b16 %v257, %v253
    %v354 = vpack.c.b16 %v258, %v254
    %v355 = vpack.c.b16 %v263, %v259
    %v356 = vpack.c.b16 %v264, %v260
    %v357 = vpack.c.b16 %v265, %v261
    %v358 = vpack.c.b16 %v266, %v262
    %v359 = vpack.c.b16 %v271, %v267
    %v360 = vpack.c.b16 %v272, %v268
    %v361 = vpack.c.b16 %v273, %v269
    %v362 = vpack.c.b16 %v274, %v270
    %v363 = vpack.c.b16 %v279, %v275
    %v364 = vpack.c.b16 %v280, %v276
    %v365 = vpack.c.b16 %v281, %v277
    %v366 = vpack.c.b16 %v282, %v278
    %v367 = vpack.c.b16 %v287, %v283
    %v368 = vpack.c.b16 %v288, %v284
    %v369 = vpack.c.b16 %v289, %v285
    %v370 = vpack.c.b16 %v290, %v286
    %v371 = vpack.c.b16 %v295, %v291
    %v372 = vpack.c.b16 %v296, %v292
    %v373 = vpack.c.b16 %v297, %v293
    %v374 = vpack.c.b16 %v298, %v294
    %v375 = vpack.c.b16 %v303, %v299
    %v376 = vpack.c.b16 %v304, %v300
    %v377 = vpack.c.b16 %v305, %v301
    %v378 = vpack.c.b16 %v306, %v302
    %v379 = vpack.c.b16 %v311, %v307
    %v380 = vpack.c.b16 %v312, %v308
    %v381 = vpack.c.b16 %v313, %v309
    %v382 = vpack.c.b16 %v314, %v310
    %v383 = vpack.c.b16 %v319, %v315
    %v384 = vpack.c.b16 %v320, %v316
    %v385 = vpack.c.b16 %v321, %v317
    %v386 = vpack.c.b16 %v322, %v318
    %451 = vmatpush.bf16.msra.mxu0 %v351
    %452 = vmatpush.bf16.msra.mxu0 %v347
    %453 = vmatpush.bf16.msra.mxu0 %v343
    %454 = vmatpush.bf16.msra.mxu0 %v339
    %455 = vmatpush.bf16.msra.mxu0 %v335
    %456 = vmatpush.bf16.msra.mxu0 %v331
    %457 = vmatpush.bf16.msra.mxu0 %v327
    %458 = vmatpush.bf16.msra.mxu0 %v323
    %459 = vmatmul.bf16.gmra.mxu0 %v127
    %v460 = vpop.f32.mrf.mxu0
    %v461 = vadd.f32 %v116, %v460
    %v462 = vpop.f32.mrf.mxu0
    %463 = vdwg.mxu0
    %464 = vmatpush.bf16.msra.mxu0 %v383
    %465 = vmatpush.bf16.msra.mxu0 %v379
    %466 = vmatpush.bf16.msra.mxu0 %v375
    %467 = vmatpush.bf16.msra.mxu0 %v371
    %468 = vmatpush.bf16.msra.mxu0 %v367
    %469 = vmatpush.bf16.msra.mxu0 %v363
    %470 = vmatpush.bf16.msra.mxu0 %v359
    %471 = vmatpush.bf16.msra.mxu0 %v355
    %472 = vmatmul.bf16.gmra.mxu0 %v128
    %v473 = vpop.f32.mrf.mxu0
    %v474 = vadd.f32 %v461, %v473
    %v475 = vpop.f32.mrf.mxu0
    %476 = vdwg.mxu0
    %477 = vmatpush.bf16.msra.mxu0 %v352
    %478 = vmatpush.bf16.msra.mxu0 %v348
    %479 = vmatpush.bf16.msra.mxu0 %v344
    %480 = vmatpush.bf16.msra.mxu0 %v340
    %481 = vmatpush.bf16.msra.mxu0 %v336
    %482 = vmatpush.bf16.msra.mxu0 %v332
    %483 = vmatpush.bf16.msra.mxu0 %v328
    %484 = vmatpush.bf16.msra.mxu0 %v324
    %485 = vmatmul.bf16.gmra.mxu0 %v127
    %v486 = vpop.f32.mrf.mxu0
    %v487 = vadd.f32 %v117, %v486
    %v488 = vpop.f32.mrf.mxu0
    %489 = vdwg.mxu0
    %490 = vmatpush.bf16.msra.mxu0 %v384
    %491 = vmatpush.bf16.msra.mxu0 %v380
    %492 = vmatpush.bf16.msra.mxu0 %v376
    %493 = vmatpush.bf16.msra.mxu0 %v372
    %494 = vmatpush.bf16.msra.mxu0 %v368
    %495 = vmatpush.bf16.msra.mxu0 %v364
    %496 = vmatpush.bf16.msra.mxu0 %v360
    %497 = vmatpush.bf16.msra.mxu0 %v356
    %498 = vmatmul.bf16.gmra.mxu0 %v128
    %v499 = vpop.f32.mrf.mxu0
    %v500 = vadd.f32 %v487, %v499
    %v501 = vpop.f32.mrf.mxu0
    %502 = vdwg.mxu0
    %503 = vmatpush.bf16.msra.mxu0 %v353
    %504 = vmatpush.bf16.msra.mxu0 %v349
    %505 = vmatpush.bf16.msra.mxu0 %v345
    %506 = vmatpush.bf16.msra.mxu0 %v341
    %507 = vmatpush.bf16.msra.mxu0 %v337
    %508 = vmatpush.bf16.msra.mxu0 %v333
    %509 = vmatpush.bf16.msra.mxu0 %v329
    %510 = vmatpush.bf16.msra.mxu0 %v325
    %511 = vmatmul.bf16.gmra.mxu0 %v127
    %v512 = vpop.f32.mrf.mxu0
    %v513 = vadd.f32 %v118, %v512
    %v514 = vpop.f32.mrf.mxu0
    %515 = vdwg.mxu0
    %516 = vmatpush.bf16.msra.mxu0 %v385
    %517 = vmatpush.bf16.msra.mxu0 %v381
    %518 = vmatpush.bf16.msra.mxu0 %v377
    %519 = vmatpush.bf16.msra.mxu0 %v373
    %520 = vmatpush.bf16.msra.mxu0 %v369
    %521 = vmatpush.bf16.msra.mxu0 %v365
    %522 = vmatpush.bf16.msra.mxu0 %v361
    %523 = vmatpush.bf16.msra.mxu0 %v357
    %524 = vmatmul.bf16.gmra.mxu0 %v128
    %v525 = vpop.f32.mrf.mxu0
    %v526 = vadd.f32 %v513, %v525
    %v527 = vpop.f32.mrf.mxu0
    %528 = vdwg.mxu0
    %529 = vmatpush.bf16.msra.mxu0 %v354
    %530 = vmatpush.bf16.msra.mxu0 %v350
    %531 = vmatpush.bf16.msra.mxu0 %v346
    %532 = vmatpush.bf16.msra.mxu0 %v342
    %533 = vmatpush.bf16.msra.mxu0 %v338
    %534 = vmatpush.bf16.msra.mxu0 %v334
    %535 = vmatpush.bf16.msra.mxu0 %v330
    %536 = vmatpush.bf16.msra.mxu0 %v326
    %537 = vmatmul.bf16.gmra.mxu0 %v127
    %v538 = vpop.f32.mrf.mxu0
    %v539 = vadd.f32 %v119, %v538
    %v540 = vpop.f32.mrf.mxu0
    %541 = vdwg.mxu0
    %542 = vmatpush.bf16.msra.mxu0 %v386
    %543 = vmatpush.bf16.msra.mxu0 %v382
    %544 = vmatpush.bf16.msra.mxu0 %v378
    %545 = vmatpush.bf16.msra.mxu0 %v374
    %546 = vmatpush.bf16.msra.mxu0 %v370
    %547 = vmatpush.bf16.msra.mxu0 %v366
    %548 = vmatpush.bf16.msra.mxu0 %v362
    %549 = vmatpush.bf16.msra.mxu0 %v358
    %550 = vmatmul.bf16.gmra.mxu0 %v128
    %v551 = vpop.f32.mrf.mxu0
    %v552 = vadd.f32 %v539, %v551
    %v553 = vpop.f32.mrf.mxu0
    %554 = vdwg.mxu0
    %v555 = vmax.f32 %v474, 0.0
    %v556 = vmax.f32 %v500, 0.0
    %v557 = vmax.f32 %v526, 0.0
    %v558 = vmax.f32 %v552, 0.0
    %v559 = vmax.f32 %v555, %v556
    %v560 = vmax.f32 %v557, %v558
    %v561 = vmax.f32 %v559, %v560
    %v562 = vpack.c.bf16 %v561, %v561
    %v563 = vld [vmem:[%s3] sm:$0xf]
    %v564 = vld [vmem:[%s3 + $0x4] sm:$0xf]
    %v565 = vld [vmem:[%s3 + $0x8] sm:$0xf]
    %v566 = vld [vmem:[%s3 + $0xc] sm:$0xf]
    %v567 = vld [vmem:[%s3 + $0x10] sm:$0xf]
    %v568 = vld [vmem:[%s3 + $0x14] sm:$0xf]
    %v569 = vld [vmem:[%s3 + $0x18] sm:$0xf]
    %v570 = vld [vmem:[%s3 + $0x1c] sm:$0xf]
    %v571 = vld [vmem:[%s3 + $0x20] sm:$0xf]
    %v572 = vld [vmem:[%s3 + $0x24] sm:$0xf]
    %v573 = vld [vmem:[%s3 + $0x28] sm:$0xf]
    %v574 = vld [vmem:[%s3 + $0x2c] sm:$0xf]
    %v575 = vld [vmem:[%s3 + $0x30] sm:$0xf]
    %v576 = vld [vmem:[%s3 + $0x34] sm:$0xf]
    %v577 = vld [vmem:[%s3 + $0x38] sm:$0xf]
    %v578 = vld [vmem:[%s3 + $0x3c] sm:$0xf]
    %v579 = vld [vmem:[%s4] sm:$0x1]
    %v581 = vperm.slane %v579, 0
    %v599 = vunpack.c.l.b16 %v563
    %v600 = vunpack.c.l.b16 %v564
    %v601 = vunpack.c.l.b16 %v565
    %v602 = vunpack.c.l.b16 %v566
    %v603 = vunpack.c.l.b16 %v567
    %v604 = vunpack.c.l.b16 %v568
    %v605 = vunpack.c.l.b16 %v569
    %v606 = vunpack.c.l.b16 %v570
    %v607 = vunpack.c.l.b16 %v571
    %v608 = vunpack.c.l.b16 %v572
    %v609 = vunpack.c.l.b16 %v573
    %v610 = vunpack.c.l.b16 %v574
    %v611 = vunpack.c.l.b16 %v575
    %v612 = vunpack.c.l.b16 %v576
    %v613 = vunpack.c.l.b16 %v577
    %v614 = vunpack.c.l.b16 %v578
    %v615 = vpack.c.b16 %v600, %v599
    %v616 = vpack.c.b16 %v602, %v601
    %v617 = vpack.c.b16 %v604, %v603
    %v618 = vpack.c.b16 %v606, %v605
    %v619 = vpack.c.b16 %v608, %v607
    %v620 = vpack.c.b16 %v610, %v609
    %v621 = vpack.c.b16 %v612, %v611
    %v622 = vpack.c.b16 %v614, %v613
    %631 = vmatpush.bf16.msra.mxu0 %v622
    %632 = vmatpush.bf16.msra.mxu0 %v621
    %633 = vmatpush.bf16.msra.mxu0 %v620
    %634 = vmatpush.bf16.msra.mxu0 %v619
    %635 = vmatpush.bf16.msra.mxu0 %v618
    %636 = vmatpush.bf16.msra.mxu0 %v617
    %637 = vmatpush.bf16.msra.mxu0 %v616
    %638 = vmatpush.bf16.msra.mxu0 %v615
    %639 = vmatmul.bf16.gmra.mxu0 %v562
    %v640 = vpop.f32.mrf.mxu0
    %v641 = vadd.f32 %v581, %v640
    %v642 = vpop.f32.mrf.mxu0
    %643 = vdwg.mxu0
    %v644 = vmax.f32 %v641, 0.0
    %645 = vrot.lane.b32.xlu0 %v644, 64
    %v646 = vpop.permute.xlu0 %645
    %v647 = vmax.f32 %v644, %v646
    %648 = vrot.lane.b32.xlu0 %v647, 32
    %v649 = vpop.permute.xlu0 %648
    %v650 = vmax.f32 %v647, %v649
    %v651 = vpack.c.bf16 %v650, %v650
    %v652 = vld [vmem:[%s5] sm:$0xf]
    %v653 = vld [vmem:[%s5 + $0x4] sm:$0xf]
    %v654 = vld [vmem:[%s5 + $0x8] sm:$0xf]
    %v655 = vld [vmem:[%s5 + $0xc] sm:$0xf]
    %v656 = vld [vmem:[%s5 + $0x10] sm:$0xf]
    %v657 = vld [vmem:[%s5 + $0x14] sm:$0xf]
    %v658 = vld [vmem:[%s5 + $0x18] sm:$0xf]
    %v659 = vld [vmem:[%s5 + $0x1c] sm:$0xf]
    %v660 = vld [vmem:[%s5 + $0x20] sm:$0xf]
    %v661 = vld [vmem:[%s5 + $0x24] sm:$0xf]
    %v662 = vld [vmem:[%s5 + $0x28] sm:$0xf]
    %v663 = vld [vmem:[%s5 + $0x2c] sm:$0xf]
    %v664 = vld [vmem:[%s5 + $0x30] sm:$0xf]
    %v665 = vld [vmem:[%s5 + $0x34] sm:$0xf]
    %v666 = vld [vmem:[%s5 + $0x38] sm:$0xf]
    %v667 = vld [vmem:[%s5 + $0x3c] sm:$0xf]
    %v668 = vld [vmem:[%s6] sm:$0x1]
    %v670 = vperm.slane %v668, 0
    %v688 = vunpack.c.l.b16 %v652
    %v689 = vunpack.c.l.b16 %v653
    %v690 = vunpack.c.l.b16 %v654
    %v691 = vunpack.c.l.b16 %v655
    %v692 = vunpack.c.l.b16 %v656
    %v693 = vunpack.c.l.b16 %v657
    %v694 = vunpack.c.l.b16 %v658
    %v695 = vunpack.c.l.b16 %v659
    %v696 = vunpack.c.l.b16 %v660
    %v697 = vunpack.c.l.b16 %v661
    %v698 = vunpack.c.l.b16 %v662
    %v699 = vunpack.c.l.b16 %v663
    %v700 = vunpack.c.l.b16 %v664
    %v701 = vunpack.c.l.b16 %v665
    %v702 = vunpack.c.l.b16 %v666
    %v703 = vunpack.c.l.b16 %v667
    %v704 = vpack.c.b16 %v689, %v688
    %v705 = vpack.c.b16 %v691, %v690
    %v706 = vpack.c.b16 %v693, %v692
    %v707 = vpack.c.b16 %v695, %v694
    %v708 = vpack.c.b16 %v697, %v696
    %v709 = vpack.c.b16 %v699, %v698
    %v710 = vpack.c.b16 %v701, %v700
    %v711 = vpack.c.b16 %v703, %v702
    %720 = vmatpush.bf16.msra.mxu0 %v711
    %721 = vmatpush.bf16.msra.mxu0 %v710
    %722 = vmatpush.bf16.msra.mxu0 %v709
    %723 = vmatpush.bf16.msra.mxu0 %v708
    %724 = vmatpush.bf16.msra.mxu0 %v707
    %725 = vmatpush.bf16.msra.mxu0 %v706
    %726 = vmatpush.bf16.msra.mxu0 %v705
    %727 = vmatpush.bf16.msra.mxu0 %v704
    %728 = vmatmul.bf16.gmra.mxu0 %v651
    %v729 = vpop.f32.mrf.mxu0
    %v730 = vadd.f32 %v670, %v729
    %v731 = vpop.f32.mrf.mxu0
    %732 = vdwg.mxu0
    %v733 = vmax.f32 %v730, 0.0
    %v734 = vpack.c.bf16 %v733, %v733
    %v735 = vld [vmem:[%s7] sm:$0xf]
    %v736 = vld [vmem:[%s7 + $0x4] sm:$0xf]
    %v737 = vld [vmem:[%s7 + $0x8] sm:$0xf]
    %v738 = vld [vmem:[%s7 + $0xc] sm:$0xf]
    %v739 = vld [vmem:[%s7 + $0x10] sm:$0xf]
    %v740 = vld [vmem:[%s7 + $0x14] sm:$0xf]
    %v741 = vld [vmem:[%s7 + $0x18] sm:$0xf]
    %v742 = vld [vmem:[%s7 + $0x1c] sm:$0xf]
    %v743 = vld [vmem:[%s8] sm:$0x1]
    %v745 = vperm.slane %v743, 0
    %v755 = vunpack.c.l.b16 %v735
    %v756 = vunpack.c.l.b16 %v736
    %v757 = vunpack.c.l.b16 %v737
    %v758 = vunpack.c.l.b16 %v738
    %v759 = vunpack.c.l.b16 %v739
    %v760 = vunpack.c.l.b16 %v740
    %v761 = vunpack.c.l.b16 %v741
    %v762 = vunpack.c.l.b16 %v742
    %v763 = vpack.c.b16 %v756, %v755
    %v764 = vpack.c.b16 %v758, %v757
    %v765 = vpack.c.b16 %v760, %v759
    %v766 = vpack.c.b16 %v762, %v761
    %vm771 = vcmask 523264
    %v773 = vsel %vm771, %v734, 0
    %775 = vmatpush.bf16.msra.mxu0 0
    %776 = vmatpush.bf16.msra.mxu0 0
    %777 = vmatpush.bf16.msra.mxu0 0
    %778 = vmatpush.bf16.msra.mxu0 0
    %779 = vmatpush.bf16.msra.mxu0 %v766
    %780 = vmatpush.bf16.msra.mxu0 %v765
    %781 = vmatpush.bf16.msra.mxu0 %v764
    %782 = vmatpush.bf16.msra.mxu0 %v763
    %783 = vmatmul.bf16.gmra.mxu0 %v773
    %v784 = vpop.f32.mrf.mxu0
    %v785 = vadd.f32 %v745, %v784
    %v786 = vpop.f32.mrf.mxu0
    %787 = vdwg.mxu0
    %788 = vst [vmem:[%s9] sm:$0xff] %v785
    // Predicated region
    $region42: #{speech_model_forward.1} parent=1 // pred_check
      _
    $region43: #{speech_model_forward.1} parent=1 // pred_check_branch
      %790 = sbr.rel (0) target = $region45
    $region44: #{speech_model_forward.1} parent=1 // pred_region
      _
    $region45: #{speech_model_forward.1} parent=1 // pred_fallthru
      _
    // Predicated region
    $region46: #{speech_model_forward.1} parent=1 // pred_check
      _
    $region47: #{speech_model_forward.1} parent=1 // pred_check_branch
      %792 = sbr.rel (0) target = $region49
    $region48: #{speech_model_forward.1} parent=1 // pred_region
      _
    $region49: #{speech_model_forward.1} parent=1 // pred_fallthru
      _
    %793 = vsyncpa [#allocation3], 1

</llo_original>
